<compile_context>
chip_gen: v5e
topology: v5e:2x2
jax: 0.10.0
libtpu: 0.0.40
codegen_flags: <defaults>
</compile_context>

<pallas_src>
import functools
import math

import jax
import jax.numpy as jnp
from jax.experimental import pallas as pl
from jax.experimental.pallas import tpu as pltpu


def _round_up(a, b):
    return ((a + b - 1) // b) * b


def _resolve_tiles(n, tm, tk):
    """Clamp/align tile sizes for n nodes (int8 A tiles need tm%32==0, tk%128==0)."""
    tm = max(32, min(tm, _round_up(n, 32)))
    tk = max(128, min(tk, _round_up(n, 128)))
    # v7x megacore: keep >=2 row tiles so the "parallel" axis shards across both TCs.
    if _round_up(n, tm) // tm < 2 and tm > 32:
        tm = max(32, _round_up((n + 1) // 2, 32))
    n_rows = _round_up(n, tm)   # destination-node (output row) padding
    n_cols = _round_up(n, tk)   # source-node (reduction) padding
    return tm, tk, n_rows, n_cols


def prepare_adjacency(adj, n_nodes=None, *, tm=512, tk=1024):
    """Pad + cast the dense adjacency to int8 ONCE (hoist out of the hot path).

    adj[dst, src] = 1 for edge src->dst.  {0,1} entries are exact in int8.
    Reuse the returned array across layers / training steps.
    """
    n = adj.shape[0] if n_nodes is None else n_nodes
    _, _, n_rows, n_cols = _resolve_tiles(n, tm, tk)
    out = jnp.zeros((n_rows, n_cols), jnp.int8)
    return out.at[: adj.shape[0], : adj.shape[1]].set(adj.astype(jnp.int8))


# ------------------- main kernel: out = A @ XW + b  (K-tiled) -------------------

def _gcn_kernel_f32out(adj_ref, xw_ref, b_ref, o_ref):
    # adj_ref: (tm, tk) int8   xw_ref: (n_cols, Fout_p) bf16 (fully VMEM-resident)
    # b_ref:   (1, Fout_p) f32 o_ref:  (tm, Fout_p) f32 (resident accumulator)
    k = pl.program_id(1)
    tk = adj_ref.shape[1]
    off = pl.multiple_of(k * tk, tk)
    part = jnp.dot(
        adj_ref[...].astype(jnp.bfloat16),           # int8 -> bf16 widen (VPU, free)
        xw_ref[pl.ds(off, tk), :],
        preferred_element_type=jnp.float32,
    )

    @pl.when(k == 0)
    def _():
        o_ref[...] = part + b_ref[...]

    @pl.when(k != 0)
    def _():
        o_ref[...] += part


def _gcn_kernel_acc(adj_ref, xw_ref, b_ref, o_ref, acc_ref):
    # Same as above but with an f32 scratch accumulator for non-f32 outputs.
    k = pl.program_id(1)
    tk = adj_ref.shape[1]
    off = pl.multiple_of(k * tk, tk)
    part = jnp.dot(
        adj_ref[...].astype(jnp.bfloat16),
        xw_ref[pl.ds(off, tk), :],
        preferred_element_type=jnp.float32,
    )

    @pl.when(k == 0)
    def _():
        acc_ref[...] = jnp.zeros_like(acc_ref)

    acc_ref[...] += part

    @pl.when(k == pl.num_programs(1) - 1)
    def _():
        o_ref[...] = (acc_ref[...] + b_ref[...]).astype(o_ref.dtype)


def gcn_layer(adj, x, weight, bias, *, tm=512, tk=1024, vmem_limit_bytes=None):
    """GCNLayer forward: out = A @ (X @ W^T) + b.

    adj:    raw (N, N) dense adjacency (adj[dst, src] = 1 for edge src->dst), or
            the padded int8 array from prepare_adjacency (preferred: hoists the
            pad/cast out of the hot path).
    x:      (N, Fin) node features
    weight: (Fout, Fin)   (torch nn.Linear convention)
    bias:   (Fout,)
    returns (N, Fout), dtype of x.
    """
    N, Fin = x.shape
    Fout = weight.shape[0]
    out_dtype = x.dtype
    Fout_p = _round_up(Fout, 128)            # lane-dense, unmasked output stores

    tm, tk, n_rows, n_cols = _resolve_tiles(N, tm, tk)

    if adj.shape == (n_rows, n_cols) and adj.dtype == jnp.int8:
        adj_i8 = adj                          # already prepared (hoisted path)
    else:
        adj_i8 = prepare_adjacency(adj, N, tm=tm, tk=tk)

    f32 = jnp.float32
    # Tiny GEMM: let XLA do it (Fin is small); quantize XW to bf16 for the
    # bandwidth-bound main kernel.  Padded source rows are zero => contribute 0.
    xw = jnp.dot(x.astype(f32), weight.astype(f32).T)           # (N, Fout)
    xw_pad = (
        jnp.zeros((n_cols, Fout_p), jnp.bfloat16)
        .at[:N, :Fout].set(xw.astype(jnp.bfloat16))
    )
    b2d = jnp.zeros((1, Fout_p), f32).at[:, :Fout].set(bias.astype(f32))

    if out_dtype == jnp.float32:
        kernel, scratch = _gcn_kernel_f32out, []
    else:
        kernel, scratch = _gcn_kernel_acc, [pltpu.VMEM((tm, Fout_p), jnp.float32)]

    grid = (n_rows // tm, n_cols // tk)
    out_pad = pl.pallas_call(
        kernel,
        out_shape=jax.ShapeDtypeStruct((n_rows, Fout_p), out_dtype),
        grid_spec=pltpu.PrefetchScalarGridSpec(
            num_scalar_prefetch=0,
            grid=grid,
            in_specs=[
                pl.BlockSpec((tm, tk), lambda i, k: (i, k)),           # A tile (int8)
                pl.BlockSpec((n_cols, Fout_p), lambda i, k: (0, 0)),   # XW, resident
                pl.BlockSpec((1, Fout_p), lambda i, k: (0, 0)),        # bias
            ],
            out_specs=pl.BlockSpec((tm, Fout_p), lambda i, k: (i, 0)),
            scratch_shapes=scratch,
        ),
        compiler_params=pltpu.CompilerParams(
            dimension_semantics=("parallel", "arbitrary"),
            vmem_limit_bytes=vmem_limit_bytes,
        ),
    )(adj_i8, xw_pad, b2d)

    return out_pad[:N, :Fout]


if __name__ == "__main__":
    key = jax.random.PRNGKey(0)
    k_adj, k_x, k_w, k_b = jax.random.split(key, 4)

    # Small synthetic graph: N nodes, in_feats -> out_feats.
    N, in_feats, out_feats = 256, 32, 16

    # Dense random adjacency (no self loops), adj[dst, src] = 1.0 for edge src->dst.
    adj = (jax.random.uniform(k_adj, (N, N)) < 0.1).astype(jnp.float32)
    adj = adj * (1.0 - jnp.eye(N, dtype=jnp.float32))

    x = jax.random.normal(k_x, (N, in_feats), dtype=jnp.float32)

    # Deterministic nn.Linear-style init: U(-1/sqrt(in), 1/sqrt(in)).
    bound = 1.0 / math.sqrt(in_feats)
    weight = jax.random.uniform(k_w, (out_feats, in_feats),
                                minval=-bound, maxval=bound, dtype=jnp.float32)
    bias = jax.random.uniform(k_b, (out_feats,),
                              minval=-bound, maxval=bound, dtype=jnp.float32)

    # Small tiles so the test exercises the multi-row-tile + K-accumulation path.
    tm, tk = 128, 128

    # Hoisted adjacency prep: pad + int8 cast ONCE, reuse across layers/steps.
    adj_i8 = jax.block_until_ready(prepare_adjacency(adj, tm=tm, tk=tk))

    gcn = jax.jit(functools.partial(gcn_layer, tm=tm, tk=tk))
    out = jax.block_until_ready(gcn(adj_i8, x, weight, bias))
    assert out.shape == (N, out_feats)

    # Convenience (un-hoisted) path must agree bit-for-bit in semantics.
    out_raw = jax.block_until_ready(gcn(adj, x, weight, bias))
    assert jnp.allclose(out, out_raw, atol=1e-6, rtol=1e-6), "prepared vs raw mismatch"

    # Full-precision reference (semantic check).
    xw_f32 = x @ weight.T
    ref_f32 = adj @ xw_f32 + bias
    # Precision-matched reference (same bf16 XW quantization the kernel applies;
    # int8 adjacency is exact for {0,1}).
    ref_bf = adj @ xw_f32.astype(jnp.bfloat16).astype(jnp.float32) + bias

    assert jnp.allclose(out, ref_bf, atol=2e-2, rtol=2e-2), "mismatch vs bf16-matched ref"
    assert jnp.allclose(out, ref_f32, atol=5e-2, rtol=5e-2), "mismatch vs f32 reference"

    print("KERNEL_OK")
</pallas_src>

<mosaic_0001>
module attributes {stable_mosaic.version = 11 : i64} {
  func.func @_gcn_kernel_f32out(%arg0: i32, %arg1: i32, %arg2: memref<128x128xi8, #tpu.memory_space<vmem>>, %arg3: memref<256x128xbf16, #tpu.memory_space<vmem>>, %arg4: memref<1x128xf32, #tpu.memory_space<vmem>>, %arg5: memref<128x128xf32, #tpu.memory_space<vmem>>) attributes {dimension_semantics = [#tpu.dimension_semantics<parallel>, #tpu.dimension_semantics<arbitrary>], iteration_bounds = array<i64: 2, 2>, scalar_prefetch = 0 : i64, scratch_operands = 0 : i64, tpu.core_type = #tpu.core_type<tc>, window_params = [{transform_indices = @transform_0, window_bounds = array<i64: 128, 128>}, {pipeline_mode = #tpu.pipeline_mode<synchronous>, transform_indices = @transform_1, window_bounds = array<i64: 256, 128>}, {pipeline_mode = #tpu.pipeline_mode<synchronous>, transform_indices = @transform_2, window_bounds = array<i64: 1, 128>}, {transform_indices = @transform_3, window_bounds = array<i64: 128, 128>}]} {
    %c128_i32 = arith.constant 128 : i32
    %0 = arith.muli %arg1, %c128_i32 : i32
    %1 = tpu.assume_multiple %0, 128 : i32
    %c0 = arith.constant 0 : index
    %c0_0 = arith.constant 0 : index
    %2 = vector.load %arg2[%c0, %c0_0] : memref<128x128xi8, #tpu.memory_space<vmem>>, vector<128x128xi8>
    %3 = arith.sitofp %2 : vector<128x128xi8> to vector<128x128xbf16>
    %4 = arith.index_cast %1 : i32 to index
    %c0_1 = arith.constant 0 : index
    %5 = vector.load %arg3[%4, %c0_1] : memref<256x128xbf16, #tpu.memory_space<vmem>>, vector<128x128xbf16>
    %cst = arith.constant dense<0.000000e+00> : vector<128x128xf32>
    %6 = tpu.matmul %3, %5, %cst {dimension_numbers = #tpu.dot_dimension_numbers<[1], [0], [0], [1], [0, 0, 1, 1], [], []>} : vector<128x128xbf16>, vector<128x128xbf16>, vector<128x128xf32> -> vector<128x128xf32>
    %c0_i32 = arith.constant 0 : i32
    %7 = arith.cmpi eq, %arg1, %c0_i32 : i32
    %8 = arith.extui %7 : i1 to i32
    %c0_i32_2 = arith.constant 0 : i32
    %9 = arith.cmpi ne, %8, %c0_i32_2 : i32
    scf.if %9 {
      %c0_5 = arith.constant 0 : index
      %c0_6 = arith.constant 0 : index
      %13 = vector.load %arg4[%c0_5, %c0_6] : memref<1x128xf32, #tpu.memory_space<vmem>>, vector<1x128xf32>
      %14 = vector.broadcast %13 : vector<1x128xf32> to vector<128x128xf32>
      %15 = arith.addf %6, %14 : vector<128x128xf32>
      %c0_7 = arith.constant 0 : index
      %c0_8 = arith.constant 0 : index
      %16 = vector.load %arg5[%c0_7, %c0_8] : memref<128x128xf32, #tpu.memory_space<vmem>>, vector<128x128xf32>
      tpu.vector_store %arg5[%c0_7, %c0_8], %15 {strides = array<i32>} : memref<128x128xf32, #tpu.memory_space<vmem>>, vector<128x128xf32>,
    } else {
    }
    %c0_i32_3 = arith.constant 0 : i32
    %10 = arith.cmpi ne, %arg1, %c0_i32_3 : i32
    %11 = arith.extui %10 : i1 to i32
    %c0_i32_4 = arith.constant 0 : i32
    %12 = arith.cmpi ne, %11, %c0_i32_4 : i32
    scf.if %12 {
      %c0_5 = arith.constant 0 : index
      %c0_6 = arith.constant 0 : index
      %13 = vector.load %arg5[%c0_5, %c0_6] : memref<128x128xf32, #tpu.memory_space<vmem>>, vector<128x128xf32>
      %14 = arith.addf %13, %6 : vector<128x128xf32>
      %c0_7 = arith.constant 0 : index
      %c0_8 = arith.constant 0 : index
      %15 = vector.load %arg5[%c0_7, %c0_8] : memref<128x128xf32, #tpu.memory_space<vmem>>, vector<128x128xf32>
      tpu.vector_store %arg5[%c0_7, %c0_8], %14 {strides = array<i32>} : memref<128x128xf32, #tpu.memory_space<vmem>>, vector<128x128xf32>,
    } else {
    }
    return
  }
  func.func @transform_0(%arg0: i32, %arg1: i32) -> (i32, i32) {
    %c0_i32 = arith.constant 0 : i32
    return %arg0, %arg1 : i32, i32
  }
  func.func @transform_1(%arg0: i32, %arg1: i32) -> (i32, i32) {
    %c0_i32 = arith.constant 0 : i32
    %c0_i32_0 = arith.constant 0 : i32
    %c0_i32_1 = arith.constant 0 : i32
    return %c0_i32, %c0_i32_0 : i32, i32
  }
  func.func @transform_2(%arg0: i32, %arg1: i32) -> (i32, i32) {
    %c0_i32 = arith.constant 0 : i32
    %c0_i32_0 = arith.constant 0 : i32
    %c0_i32_1 = arith.constant 0 : i32
    return %c0_i32, %c0_i32_0 : i32, i32
  }
  func.func @transform_3(%arg0: i32, %arg1: i32) -> (i32, i32) {
    %c0_i32 = arith.constant 0 : i32
    %c0_i32_0 = arith.constant 0 : i32
    return %arg0, %c0_i32 : i32, i32
  }
}

</mosaic_0001>

<llo_original>
// kernel: gcn_layer.1
$region0: #{gcn_layer.1}
  #allocation0 [shape = 'u32[]', space=smem, size = 0x4, offset = 0x4, fixed_abs, tag = 'smem constant byte address 0x4 - core index']
  #allocation1 [shape = 'u32[72,128]{1,0:T(1,128)}', space=vmem, size = 0x9000, scoped, tag = 'internal scratch']
  %s0 = inlined_call_operand.vmem [shape: s8[256,256], index: 0, kind: input, shape index: {}]
  %s1 = inlined_call_operand.vmem [shape: bf16[256,128], index: 1, kind: input, shape index: {}]
  %s2 = inlined_call_operand.vmem [shape: f32[1,128], index: 2, kind: input, shape index: {}]
  %s3 = inlined_call_operand.vmem [shape: f32[256,128], index: 3, kind: output, shape index: {}]
  %s4 = sld [smem:[#allocation0]]
  $region91: #{gcn_layer.1} parent=0
    _
  %s6 = ssub.s32 1, %s4
  %s7 = scalar_select 0, %s6, %s4
  $region1: #{gcn_layer.1} parent=0
    #allocation2 [shape = 'u8[32768]{0}', space=vmem, size = 0x8000, scoped, tag = 'input window, operand 0']
    loop: start=0, step=1, limit=6
    $region2: #{gcn_layer.1} parent=1 // loop_pre_header
      _
    $region3: #{gcn_layer.1} parent=1 // loop_header
      %s9 = sphi 0, %s13
      %p10 = scmp.ge.s32.totalorder %s9, 6
      %s16 = sphi 0, %s28
      %s17 = sphi 0, %s24
      %s18 = sphi 0, %s16
      %s19 = sphi 0, %s17
      %s20 = sphi 0, %s18
      %s21 = sphi 0, %s19
      %s33 = sphi 0, %s35
      %s36 = sphi 0, %s33
      %s37 = sphi 0, %s36
      %s53 = sphi 0, %s37
      %s57 = sphi 0, %s57
      %s59 = sphi 0, %s57
      %s60 = sphi 0, %s59
      %s74 = sphi 0, %s60
      %s78 = sphi 0, %s78
      %s80 = sphi 0, %s78
      %s81 = sphi 0, %s80
      %s95 = sphi 0, %s81
      %s101 = sphi 0, %s103
      %s104 = sphi 0, %s101
      %s105 = sphi 0, %s104
      %s121 = sphi 0, %s105
    $region4: #{gcn_layer.1} parent=1 // loop_header_branch
      %12 = sbr.rel (%p10) target = $region8
    $region5: #{gcn_layer.1} parent=1 // loop_body
      %s14 = ssub.s32 %s9, 1
      %s15 = ssub.s32 %s9, 2
      %s22 = sadd.s32 1, %s17
      %p23 = scmp.ge.s32.totalorder %s22, 2
      %s24 = scalar_select %p23, 0, %s22
      %s25 = sadd.s32 1, %s16
      %s26 = scalar_select %p23, %s25, %s16
      %p27 = scmp.ge.s32.totalorder %s26, 2
      %s28 = scalar_select %p27, 0, %s26
      %s29 = ssub.s32 %s16, %s28
      %s30 = ssub.s32 %s17, %s24
      %s31 = sor.u32 %s29, %s30
      %p32 = scmp.eq.s32.totalorder %s31, 0
      %s34 = sadd.s32 %s33, 1
      %s35 = scalar_select %p32, %s33, %s34
      %p38 = pneg %p32
      %p39 = scmp.eq.s32.totalorder %s9, 3
      %p40 = por %p38, %p39
      %p41 = scmp.ne.s32.totalorder %s33, %s36
      %p42 = scmp.eq.s32.totalorder %s9, 0
      %p43 = por %p41, %p42
      %p44 = scmp.ne.s32.totalorder %s33, %s36
      %p45 = scmp.eq.s32.totalorder %s14, 3
      %p46 = por %p44, %p45
      %p47 = scmp.ne.s32.totalorder %s36, %s37
      %p48 = scmp.eq.s32.totalorder %s14, 0
      %p49 = por %p47, %p48
      %p50 = scmp.ne.s32.totalorder %s36, %s37
      %p51 = scmp.eq.s32.totalorder %s15, 3
      %p52 = por %p50, %p51
      %p54 = scmp.ne.s32.totalorder %s37, %s53
      %p55 = scmp.eq.s32.totalorder %s15, 0
      %p56 = por %p54, %p55
      %s58 = sadd.s32 %s57, 1
      %p61 = scmp.eq.s32.totalorder %s9, 3
      %p62 = scmp.ne.s32.totalorder %s57, %s59
      %p63 = scmp.eq.s32.totalorder %s9, 0
      %p64 = por %p62, %p63
      %p65 = scmp.ne.s32.totalorder %s57, %s59
      %p66 = scmp.eq.s32.totalorder %s14, 3
      %p67 = por %p65, %p66
      %p68 = scmp.ne.s32.totalorder %s59, %s60
      %p69 = scmp.eq.s32.totalorder %s14, 0
      %p70 = por %p68, %p69
      %p71 = scmp.ne.s32.totalorder %s59, %s60
      %p72 = scmp.eq.s32.totalorder %s15, 3
      %p73 = por %p71, %p72
      %p75 = scmp.ne.s32.totalorder %s60, %s74
      %p76 = scmp.eq.s32.totalorder %s15, 0
      %p77 = por %p75, %p76
      %s79 = sadd.s32 %s78, 1
      %p82 = scmp.eq.s32.totalorder %s9, 3
      %p83 = scmp.ne.s32.totalorder %s78, %s80
      %p84 = scmp.eq.s32.totalorder %s9, 0
      %p85 = por %p83, %p84
      %p86 = scmp.ne.s32.totalorder %s78, %s80
      %p87 = scmp.eq.s32.totalorder %s14, 3
      %p88 = por %p86, %p87
      %p89 = scmp.ne.s32.totalorder %s80, %s81
      %p90 = scmp.eq.s32.totalorder %s14, 0
      %p91 = por %p89, %p90
      %p92 = scmp.ne.s32.totalorder %s80, %s81
      %p93 = scmp.eq.s32.totalorder %s15, 3
      %p94 = por %p92, %p93
      %p96 = scmp.ne.s32.totalorder %s81, %s95
      %p97 = scmp.eq.s32.totalorder %s15, 0
      %p98 = por %p96, %p97
      %s99 = ssub.s32 %s16, %s28
      %p100 = scmp.eq.s32.totalorder %s99, 0
      %s102 = sadd.s32 %s101, 1
      %s103 = scalar_select %p100, %s101, %s102
      %p106 = pneg %p100
      %p107 = scmp.eq.s32.totalorder %s9, 3
      %p108 = por %p106, %p107
      %p109 = scmp.ne.s32.totalorder %s101, %s104
      %p110 = scmp.eq.s32.totalorder %s9, 0
      %p111 = por %p109, %p110
      %p112 = scmp.ne.s32.totalorder %s101, %s104
      %p113 = scmp.eq.s32.totalorder %s14, 3
      %p114 = por %p112, %p113
      %p115 = scmp.ne.s32.totalorder %s104, %s105
      %p116 = scmp.eq.s32.totalorder %s14, 0
      %p117 = por %p115, %p116
      %p118 = scmp.ne.s32.totalorder %s104, %s105
      %p119 = scmp.eq.s32.totalorder %s15, 3
      %p120 = por %p118, %p119
      %p122 = scmp.ne.s32.totalorder %s105, %s121
      %p123 = scmp.eq.s32.totalorder %s15, 0
      %p124 = por %p122, %p123
      %p125 = scmp.le.s32.totalorder 1, %s9
      %p126 = scmp.lt.s32.totalorder %s9, 5
      %p127 = pnand %p125, %p126
      %p128 = pneg %p127
      // Predicated region
      $region9: #{gcn_layer.1} parent=5 // pred_check
        _
      $region10: #{gcn_layer.1} parent=5 // pred_check_branch
        %130 = sbr.rel (%p127) target = $region12
      $region11: #{gcn_layer.1} parent=5 // pred_region
        %s131 = ssub.s32 %s9, 1
        // Predicated region
        $region13: #{gcn_layer.1} parent=11 // pred_check
          %p132 = pneg %p70
        $region14: #{gcn_layer.1} parent=11 // pred_check_branch
          %134 = sbr.rel (%p132) target = $region16
        $region15: #{gcn_layer.1} parent=11 // pred_region
          _
        $region16: #{gcn_layer.1} parent=11 // pred_fallthru
          _
        // Predicated region
        $region17: #{gcn_layer.1} parent=11 // pred_check
          %p135 = pneg %p91
        $region18: #{gcn_layer.1} parent=11 // pred_check_branch
          %137 = sbr.rel (%p135) target = $region20
        $region19: #{gcn_layer.1} parent=11 // pred_region
          _
        $region20: #{gcn_layer.1} parent=11 // pred_fallthru
          _
      $region12: #{gcn_layer.1} parent=5 // pred_fallthru
        _
      %p138 = scmp.lt.s32.totalorder %s9, 4
      // Predicated region
      $region21: #{gcn_layer.1} parent=5 // pred_check
        %p139 = pneg %p138
      $region22: #{gcn_layer.1} parent=5 // pred_check_branch
        %141 = sbr.rel (%p139) target = $region24
      $region23: #{gcn_layer.1} parent=5 // pred_region
        // Predicated region
        $region25: #{gcn_layer.1} parent=23 // pred_check
          %p142 = pneg %p43
        $region26: #{gcn_layer.1} parent=23 // pred_check_branch
          %144 = sbr.rel (%p142) target = $region28
        $region27: #{gcn_layer.1} parent=23 // pred_region
          %s145 = sand.u32 %s33, 1
          %s146 = sand.u32 %s33, 1
          %s147 = smul.addr %s146, 32
          %s148 = scalar_lea.vmem [#allocation2], %s147
          %s149 = smul.u32 4, %s16
          %s150 = smul.addr %s149, 2
          %s151 = sadd.s32 %s17, %s150
          %s152 = smul.addr %s151, 8
          %s153 = scalar_lea.vmem %s0, %s152
          // Predicated region
          $region29: #{gcn_layer.1} parent=27 // pred_check
            _
          $region30: #{gcn_layer.1} parent=27 // pred_check_branch
            %155 = sbr.rel (0) target = $region32
          $region31: #{gcn_layer.1} parent=27 // pred_region
            // Predicated region
            $region33: #{gcn_layer.1} parent=31 // pred_check
              _
            $region34: #{gcn_layer.1} parent=31 // pred_check_branch
              %157 = sbr.rel (0) target = $region36
            $region35: #{gcn_layer.1} parent=31 // pred_region
              // Predicated region
              $region48: #{gcn_layer.1} parent=35 // pred_check
                _
              $region49: #{gcn_layer.1} parent=35 // pred_check_branch
                %179 = sbr.rel (0) target = $region51
              $region50: #{gcn_layer.1} parent=35 // pred_region
                loop: start=0, step=1, limit=1
                $region52: #{gcn_layer.1} parent=50 // loop_pre_header
                  _
                $region53: #{gcn_layer.1} parent=50 // loop_header
                  %s181 = sphi 0, %s185
                  %p182 = scmp.ge.s32.totalorder %s181, 1
                  %s186 = sphi %s153, %s153
                  %s187 = sphi %s148, %s148
                $region54: #{gcn_layer.1} parent=50 // loop_header_branch
                  %184 = sbr.rel (%p182) target = $region58
                $region55: #{gcn_layer.1} parent=50 // loop_body
                  %v188 = vld [vmem:[%s186] sm:$0xff]
                  %189 = vst [vmem:[%s187] sm:$0xff] %v188
                  %v190 = vld [vmem:[%s186 + $0x10] sm:$0xff]
                  %191 = vst [vmem:[%s187 + $0x8] sm:$0xff] %v190
                  %v192 = vld [vmem:[%s186 + $0x20] sm:$0xff]
                  %193 = vst [vmem:[%s187 + $0x10] sm:$0xff] %v192
                  %v194 = vld [vmem:[%s186 + $0x30] sm:$0xff]
                  %195 = vst [vmem:[%s187 + $0x18] sm:$0xff] %v194
                $region56: #{gcn_layer.1} parent=50 // loop_footer
                  %s185 = sadd.s32 1, %s181
                $region57: #{gcn_layer.1} parent=50 // loop_footer_branch
                  %180 = sbr.rel target = $region53
                $region58: #{gcn_layer.1} parent=50 // loop_exit
                  _
              $region51: #{gcn_layer.1} parent=35 // pred_fallthru
                _
              // Predicated region
              $region59: #{gcn_layer.1} parent=35 // pred_check
                _
              $region60: #{gcn_layer.1} parent=35 // pred_check_branch
                %197 = sbr.rel target = $region62
              $region61: #{gcn_layer.1} parent=35 // pred_region
                _
              $region62: #{gcn_layer.1} parent=35 // pred_fallthru
                _
            $region36: #{gcn_layer.1} parent=31 // pred_fallthru
              _
            // Predicated region
            $region37: #{gcn_layer.1} parent=31 // pred_check
              _
            $region38: #{gcn_layer.1} parent=31 // pred_check_branch
              %159 = sbr.rel target = $region40
            $region39: #{gcn_layer.1} parent=31 // pred_region
              %s161 = ssub.s32 256, 1
              loop: start=0, step=1, limit=1
              $region41: #{gcn_layer.1} parent=39 // loop_pre_header
                _
              $region42: #{gcn_layer.1} parent=39 // loop_header
                %s163 = sphi 0, %s167
                %p164 = scmp.ge.s32.totalorder %s163, 1
                %s168 = sphi %s153, %s153
                %s169 = sphi %s148, %s148
              $region43: #{gcn_layer.1} parent=39 // loop_header_branch
                %166 = sbr.rel (%p164) target = $region47
              $region44: #{gcn_layer.1} parent=39 // loop_body
                %v170 = vld [vmem:[%s168] sm:%s161]
                %171 = vst [vmem:[%s169] sm:%s161] %v170
                %v172 = vld [vmem:[%s168 + $0x10] sm:%s161]
                %173 = vst [vmem:[%s169 + $0x8] sm:%s161] %v172
                %v174 = vld [vmem:[%s168 + $0x20] sm:%s161]
                %175 = vst [vmem:[%s169 + $0x10] sm:%s161] %v174
                %v176 = vld [vmem:[%s168 + $0x30] sm:%s161]
                %177 = vst [vmem:[%s169 + $0x18] sm:%s161] %v176
              $region45: #{gcn_layer.1} parent=39 // loop_footer
                %s167 = sadd.s32 1, %s163
              $region46: #{gcn_layer.1} parent=39 // loop_footer_branch
                %162 = sbr.rel target = $region42
              $region47: #{gcn_layer.1} parent=39 // loop_exit
                _
            $region40: #{gcn_layer.1} parent=31 // pred_fallthru
              _
          $region32: #{gcn_layer.1} parent=27 // pred_fallthru
            _
          %198 = vnop
        $region28: #{gcn_layer.1} parent=23 // pred_fallthru
          _
      $region24: #{gcn_layer.1} parent=5 // pred_fallthru
        _
      %p199 = scmp.le.s32.totalorder 1, %s9
      %p200 = scmp.lt.s32.totalorder %s9, 5
      %p201 = pnand %p199, %p200
      %p202 = pneg %p201
      // Predicated region
      $region63: #{gcn_layer.1} parent=5 // pred_check
        _
      $region64: #{gcn_layer.1} parent=5 // pred_check_branch
        %204 = sbr.rel (%p201) target = $region66
      $region65: #{gcn_layer.1} parent=5 // pred_region
        %s205 = ssub.s32 %s9, 1
        %s206 = sand.u32 %s36, 1
        %s207 = sand.u32 %s36, 1
        %s208 = smul.addr %s207, 32
        %s209 = scalar_lea.vmem [#allocation2], %s208
        // Predicated region
        $region67: #{gcn_layer.1} parent=65 // pred_check
          %p210 = pneg %p49
        $region68: #{gcn_layer.1} parent=65 // pred_check_branch
          %212 = sbr.rel (%p210) target = $region70
        $region69: #{gcn_layer.1} parent=65 // pred_region
          _
        $region70: #{gcn_layer.1} parent=65 // pred_fallthru
          _
        %s213 = sand.u32 %s36, 1
        %s214 = sand.u32 %s36, 1
        %s215 = smul.addr %s214, 32
        %s216 = scalar_lea.vmem [#allocation2], %s215
        %p217 = pneg %p49
        %p218 = pneg %p46
        %p219 = pneg %p70
        %p220 = pneg %p67
        %p221 = pneg %p91
        %p222 = pneg %p88
        %p223 = pneg %p117
        %p224 = pneg %p114
        %s225 = smul.u32 16, %s18
        %p226 = scmp.lt.s32.totalorder %s225, 31
        %s227 = scalar_select %p226, %s225, 31
        %s228 = smul.addr %s227, 8
        %s229 = scalar_lea.vmem %s3, %s228
        %s230 = smul.u32 4, %s18
        %s231 = smul.u32 16, %s18
        %p232 = scmp.lt.s32.totalorder %s231, 31
        %s233 = scalar_select %p232, %s231, 31
        %s234 = smul.addr %s233, 8
        %s235 = scalar_lea.vmem %s3, %s234
        %s236 = smul.u32 16, %s18
        %s237 = smul.u32 %s19, 128
        %v238 = vld [vmem:[%s209] sm:$0xff]
        %v239 = vld [vmem:[%s209 + $0x8] sm:$0xff]
        %v240 = vld [vmem:[%s209 + $0x10] sm:$0xff]
        %v241 = vld [vmem:[%s209 + $0x18] sm:$0xff]
        %v242 = vunpack.c.0.s8 %v238
        %v243 = vunpack.c.1.s8 %v238
        %v244 = vunpack.c.2.s8 %v238
        %v245 = vunpack.c.3.s8 %v238
        %v246 = vunpack.c.0.s8 %v239
        %v247 = vunpack.c.1.s8 %v239
        %v248 = vunpack.c.2.s8 %v239
        %v249 = vunpack.c.3.s8 %v239
        %v250 = vunpack.c.0.s8 %v240
        %v251 = vunpack.c.1.s8 %v240
        %v252 = vunpack.c.2.s8 %v240
        %v253 = vunpack.c.3.s8 %v240
        %v254 = vunpack.c.0.s8 %v241
        %v255 = vunpack.c.1.s8 %v241
        %v256 = vunpack.c.2.s8 %v241
        %v257 = vunpack.c.3.s8 %v241
        %v258 = vcvt.s32.f32 %v242
        %v259 = vcvt.s32.f32 %v243
        %v260 = vcvt.s32.f32 %v244
        %v261 = vcvt.s32.f32 %v245
        %v262 = vcvt.s32.f32 %v246
        %v263 = vcvt.s32.f32 %v247
        %v264 = vcvt.s32.f32 %v248
        %v265 = vcvt.s32.f32 %v249
        %v266 = vcvt.s32.f32 %v250
        %v267 = vcvt.s32.f32 %v251
        %v268 = vcvt.s32.f32 %v252
        %v269 = vcvt.s32.f32 %v253
        %v270 = vcvt.s32.f32 %v254
        %v271 = vcvt.s32.f32 %v255
        %v272 = vcvt.s32.f32 %v256
        %v273 = vcvt.s32.f32 %v257
        %v274 = vpack.c.bf16 %v259, %v258
        %v275 = vpack.c.bf16 %v261, %v260
        %v276 = vpack.c.bf16 %v263, %v262
        %v277 = vpack.c.bf16 %v265, %v264
        %v278 = vpack.c.bf16 %v267, %v266
        %v279 = vpack.c.bf16 %v269, %v268
        %v280 = vpack.c.bf16 %v271, %v270
        %v281 = vpack.c.bf16 %v273, %v272
        %s282 = sshra.s32 %s237, 3
        %s283 = sand.u32 %s237, 7
        %s284 = smul.addr %s282, 4
        %s285 = scalar_lea.vmem %s1, %s284
        %v286 = vld [vmem:[%s285] sm:$0xf]
        %v287 = vld [vmem:[%s285 + $0x4] sm:$0xf]
        %v288 = vld [vmem:[%s285 + $0x8] sm:$0xf]
        %v289 = vld [vmem:[%s285 + $0xc] sm:$0xf]
        %v290 = vld [vmem:[%s285 + $0x10] sm:$0xf]
        %v291 = vld [vmem:[%s285 + $0x14] sm:$0xf]
        %v292 = vld [vmem:[%s285 + $0x18] sm:$0xf]
        %v293 = vld [vmem:[%s285 + $0x1c] sm:$0xf]
        %v294 = vld [vmem:[%s285 + $0x20] sm:$0xf]
        %v295 = vld [vmem:[%s285 + $0x24] sm:$0xf]
        %v296 = vld [vmem:[%s285 + $0x28] sm:$0xf]
        %v297 = vld [vmem:[%s285 + $0x2c] sm:$0xf]
        %v298 = vld [vmem:[%s285 + $0x30] sm:$0xf]
        %v299 = vld [vmem:[%s285 + $0x34] sm:$0xf]
        %v300 = vld [vmem:[%s285 + $0x38] sm:$0xf]
        %v301 = vld [vmem:[%s285 + $0x3c] sm:$0xf]
        %v318 = vunpack.c.l.b16 %v286
        %v319 = vunpack.c.l.b16 %v287
        %v320 = vunpack.c.l.b16 %v288
        %v321 = vunpack.c.l.b16 %v289
        %v322 = vunpack.c.l.b16 %v290
        %v323 = vunpack.c.l.b16 %v291
        %v324 = vunpack.c.l.b16 %v292
        %v325 = vunpack.c.l.b16 %v293
        %v326 = vunpack.c.l.b16 %v294
        %v327 = vunpack.c.l.b16 %v295
        %v328 = vunpack.c.l.b16 %v296
        %v329 = vunpack.c.l.b16 %v297
        %v330 = vunpack.c.l.b16 %v298
        %v331 = vunpack.c.l.b16 %v299
        %v332 = vunpack.c.l.b16 %v300
        %v333 = vunpack.c.l.b16 %v301
        %v334 = vpack.c.b16 %v319, %v318
        %v335 = vpack.c.b16 %v321, %v320
        %v336 = vpack.c.b16 %v323, %v322
        %v337 = vpack.c.b16 %v325, %v324
        %v338 = vpack.c.b16 %v327, %v326
        %v339 = vpack.c.b16 %v329, %v328
        %v340 = vpack.c.b16 %v331, %v330
        %v341 = vpack.c.b16 %v333, %v332
        %350 = vmatpush.bf16.msra.mxu0 %v341
        %351 = vmatpush.bf16.msra.mxu0 %v340
        %352 = vmatpush.bf16.msra.mxu0 %v339
        %353 = vmatpush.bf16.msra.mxu0 %v338
        %354 = vmatpush.bf16.msra.mxu0 %v337
        %355 = vmatpush.bf16.msra.mxu0 %v336
        %356 = vmatpush.bf16.msra.mxu0 %v335
        %357 = vmatpush.bf16.msra.mxu0 %v334
        %358 = vmatmul.bf16.gmra.mxu0 %v274
        %v359 = vpop.f32.mrf.mxu0
        %v360 = vadd.f32 0.0, %v359
        %v361 = vpop.f32.mrf.mxu0
        %v362 = vadd.f32 0.0, %v361
        %363 = vmatmul.bf16.gmra.mxu0 %v275
        %v364 = vpop.f32.mrf.mxu0
        %v365 = vadd.f32 0.0, %v364
        %v366 = vpop.f32.mrf.mxu0
        %v367 = vadd.f32 0.0, %v366
        %368 = vmatmul.bf16.gmra.mxu0 %v276
        %v369 = vpop.f32.mrf.mxu0
        %v370 = vadd.f32 0.0, %v369
        %v371 = vpop.f32.mrf.mxu0
        %v372 = vadd.f32 0.0, %v371
        %373 = vmatmul.bf16.gmra.mxu0 %v277
        %v374 = vpop.f32.mrf.mxu0
        %v375 = vadd.f32 0.0, %v374
        %v376 = vpop.f32.mrf.mxu0
        %v377 = vadd.f32 0.0, %v376
        %378 = vmatmul.bf16.gmra.mxu0 %v278
        %v379 = vpop.f32.mrf.mxu0
        %v380 = vadd.f32 0.0, %v379
        %v381 = vpop.f32.mrf.mxu0
        %v382 = vadd.f32 0.0, %v381
        %383 = vmatmul.bf16.gmra.mxu0 %v279
        %v384 = vpop.f32.mrf.mxu0
        %v385 = vadd.f32 0.0, %v384
        %v386 = vpop.f32.mrf.mxu0
        %v387 = vadd.f32 0.0, %v386
        %388 = vmatmul.bf16.gmra.mxu0 %v280
        %v389 = vpop.f32.mrf.mxu0
        %v390 = vadd.f32 0.0, %v389
        %v391 = vpop.f32.mrf.mxu0
        %v392 = vadd.f32 0.0, %v391
        %393 = vmatmul.bf16.gmra.mxu0 %v281
        %v394 = vpop.f32.mrf.mxu0
        %v395 = vadd.f32 0.0, %v394
        %v396 = vpop.f32.mrf.mxu0
        %v397 = vadd.f32 0.0, %v396
        %398 = vdwg.mxu0
        %p399 = scmp.eq.s32.totalorder %s19, 0
        // Predicated region
        $region71: #{gcn_layer.1} parent=65 // pred_check
          %p400 = pneg %p399
        $region72: #{gcn_layer.1} parent=65 // pred_check_branch
          %402 = sbr.rel (%p400) target = $region74
        $region73: #{gcn_layer.1} parent=65 // pred_region
          %v403 = vld [vmem:[%s2] sm:$0x1]
          %v405 = vperm.slane %v403, 0
          %v407 = vadd.f32 %v360, %v405
          %v408 = vadd.f32 %v362, %v405
          %v409 = vadd.f32 %v365, %v405
          %v410 = vadd.f32 %v367, %v405
          %v411 = vadd.f32 %v370, %v405
          %v412 = vadd.f32 %v372, %v405
          %v413 = vadd.f32 %v375, %v405
          %v414 = vadd.f32 %v377, %v405
          %v415 = vadd.f32 %v380, %v405
          %v416 = vadd.f32 %v382, %v405
          %v417 = vadd.f32 %v385, %v405
          %v418 = vadd.f32 %v387, %v405
          %v419 = vadd.f32 %v390, %v405
          %v420 = vadd.f32 %v392, %v405
          %v421 = vadd.f32 %v395, %v405
          %v422 = vadd.f32 %v397, %v405
          %423 = vst [vmem:[%s235] sm:$0xff] %v407
          %424 = vst [vmem:[%s235 + $0x8] sm:$0xff] %v408
          %425 = vst [vmem:[%s235 + $0x10] sm:$0xff] %v409
          %426 = vst [vmem:[%s235 + $0x18] sm:$0xff] %v410
          %427 = vst [vmem:[%s235 + $0x20] sm:$0xff] %v411
          %428 = vst [vmem:[%s235 + $0x28] sm:$0xff] %v412
          %429 = vst [vmem:[%s235 + $0x30] sm:$0xff] %v413
          %430 = vst [vmem:[%s235 + $0x38] sm:$0xff] %v414
          %431 = vst [vmem:[%s235 + $0x40] sm:$0xff] %v415
          %432 = vst [vmem:[%s235 + $0x48] sm:$0xff] %v416
          %433 = vst [vmem:[%s235 + $0x50] sm:$0xff] %v417
          %434 = vst [vmem:[%s235 + $0x58] sm:$0xff] %v418
          %435 = vst [vmem:[%s235 + $0x60] sm:$0xff] %v419
          %436 = vst [vmem:[%s235 + $0x68] sm:$0xff] %v420
          %437 = vst [vmem:[%s235 + $0x70] sm:$0xff] %v421
          %438 = vst [vmem:[%s235 + $0x78] sm:$0xff] %v422
        $region74: #{gcn_layer.1} parent=65 // pred_fallthru
          _
        %p439 = scmp.ne.s32.totalorder %s19, 0
        // Predicated region
        $region75: #{gcn_layer.1} parent=65 // pred_check
          %p440 = pneg %p439
        $region76: #{gcn_layer.1} parent=65 // pred_check_branch
          %442 = sbr.rel (%p440) target = $region78
        $region77: #{gcn_layer.1} parent=65 // pred_region
          %v443 = vld [vmem:[%s235] sm:$0xff]
          %v444 = vld [vmem:[%s235 + $0x8] sm:$0xff]
          %v445 = vld [vmem:[%s235 + $0x10] sm:$0xff]
          %v446 = vld [vmem:[%s235 + $0x18] sm:$0xff]
          %v447 = vld [vmem:[%s235 + $0x20] sm:$0xff]
          %v448 = vld [vmem:[%s235 + $0x28] sm:$0xff]
          %v449 = vld [vmem:[%s235 + $0x30] sm:$0xff]
          %v450 = vld [vmem:[%s235 + $0x38] sm:$0xff]
          %v451 = vld [vmem:[%s235 + $0x40] sm:$0xff]
          %v452 = vld [vmem:[%s235 + $0x48] sm:$0xff]
          %v453 = vld [vmem:[%s235 + $0x50] sm:$0xff]
          %v454 = vld [vmem:[%s235 + $0x58] sm:$0xff]
          %v455 = vld [vmem:[%s235 + $0x60] sm:$0xff]
          %v456 = vld [vmem:[%s235 + $0x68] sm:$0xff]
          %v457 = vld [vmem:[%s235 + $0x70] sm:$0xff]
          %v458 = vld [vmem:[%s235 + $0x78] sm:$0xff]
          %v459 = vadd.f32 %v443, %v360
          %v460 = vadd.f32 %v444, %v362
          %v461 = vadd.f32 %v445, %v365
          %v462 = vadd.f32 %v446, %v367
          %v463 = vadd.f32 %v447, %v370
          %v464 = vadd.f32 %v448, %v372
          %v465 = vadd.f32 %v449, %v375
          %v466 = vadd.f32 %v450, %v377
          %v467 = vadd.f32 %v451, %v380
          %v468 = vadd.f32 %v452, %v382
          %v469 = vadd.f32 %v453, %v385
          %v470 = vadd.f32 %v454, %v387
          %v471 = vadd.f32 %v455, %v390
          %v472 = vadd.f32 %v456, %v392
          %v473 = vadd.f32 %v457, %v395
          %v474 = vadd.f32 %v458, %v397
          %475 = vst [vmem:[%s235] sm:$0xff] %v459
          %476 = vst [vmem:[%s235 + $0x8] sm:$0xff] %v460
          %477 = vst [vmem:[%s235 + $0x10] sm:$0xff] %v461
          %478 = vst [vmem:[%s235 + $0x18] sm:$0xff] %v462
          %479 = vst [vmem:[%s235 + $0x20] sm:$0xff] %v463
          %480 = vst [vmem:[%s235 + $0x28] sm:$0xff] %v464
          %481 = vst [vmem:[%s235 + $0x30] sm:$0xff] %v465
          %482 = vst [vmem:[%s235 + $0x38] sm:$0xff] %v466
          %483 = vst [vmem:[%s235 + $0x40] sm:$0xff] %v467
          %484 = vst [vmem:[%s235 + $0x48] sm:$0xff] %v468
          %485 = vst [vmem:[%s235 + $0x50] sm:$0xff] %v469
          %486 = vst [vmem:[%s235 + $0x58] sm:$0xff] %v470
          %487 = vst [vmem:[%s235 + $0x60] sm:$0xff] %v471
          %488 = vst [vmem:[%s235 + $0x68] sm:$0xff] %v472
          %489 = vst [vmem:[%s235 + $0x70] sm:$0xff] %v473
          %490 = vst [vmem:[%s235 + $0x78] sm:$0xff] %v474
        $region78: #{gcn_layer.1} parent=65 // pred_fallthru
          _
        %s491 = smul.u32 16, %s18
        %p492 = scmp.lt.s32.totalorder %s491, 31
        %s493 = scalar_select %p492, %s491, 31
        %s494 = smul.addr %s493, 8
        %s495 = scalar_lea.vmem %s3, %s494
        // Predicated region
        $region79: #{gcn_layer.1} parent=65 // pred_check
          %p496 = pneg %p114
        $region80: #{gcn_layer.1} parent=65 // pred_check_branch
          %498 = sbr.rel (%p496) target = $region82
        $region81: #{gcn_layer.1} parent=65 // pred_region
          %s499 = smul.u32 16, %s18
        $region82: #{gcn_layer.1} parent=65 // pred_fallthru
          _
      $region66: #{gcn_layer.1} parent=5 // pred_fallthru
        _
      %p500 = scmp.le.s32.totalorder 2, %s9
      // Predicated region
      $region83: #{gcn_layer.1} parent=5 // pred_check
        %p501 = pneg %p500
      $region84: #{gcn_layer.1} parent=5 // pred_check_branch
        %503 = sbr.rel (%p501) target = $region86
      $region85: #{gcn_layer.1} parent=5 // pred_region
        %s504 = ssub.s32 %s9, 2
        // Predicated region
        $region87: #{gcn_layer.1} parent=85 // pred_check
          %p505 = pneg %p120
        $region88: #{gcn_layer.1} parent=85 // pred_check_branch
          %507 = sbr.rel (%p505) target = $region90
        $region89: #{gcn_layer.1} parent=85 // pred_region
          %s508 = smul.u32 16, %s20
          %p509 = scmp.lt.s32.totalorder %s508, 31
          %s510 = scalar_select %p509, %s508, 31
          %s511 = smul.addr %s510, 8
          %s512 = scalar_lea.vmem %s3, %s511
        $region90: #{gcn_layer.1} parent=85 // pred_fallthru
          _
      $region86: #{gcn_layer.1} parent=5 // pred_fallthru
        _
    $region6: #{gcn_layer.1} parent=1 // loop_footer
      %s13 = sadd.s32 1, %s9
    $region7: #{gcn_layer.1} parent=1 // loop_footer_branch
      %8 = sbr.rel target = $region3
    $region8: #{gcn_layer.1} parent=1 // loop_exit
      _

</llo_original>
